<compile_context>
chip_gen: v5e
topology: v5e:2x2
jax: 0.10.0
libtpu: 0.0.40
codegen_flags: <defaults>
</compile_context>

<pallas_src>
import jax
import jax.numpy as jnp
from jax.experimental import pallas as pl
from jax.experimental.pallas import tpu as pltpu


def _linear_kernel(x_ref, wt_ref, b_ref, o_ref):
    # x_ref:  (TILE_B, D) VMEM  -- streamed per grid step (moving MXU operand)
    # wt_ref: (D, 1)      VMEM  -- resident (stationary MXU operand)
    # b_ref:  (1,)        SMEM scalar
    # o_ref:  (TILE_B, 1) VMEM
    o_ref[...] = (
        jnp.dot(x_ref[...], wt_ref[...], preferred_element_type=jnp.float32)
        + b_ref[0]
    )


def _x_block_target_bytes():
    """Per-x-block byte target, derived from this generation's VMEM capacity."""
    try:
        vmem = pltpu.get_tpu_info().vmem_capacity_bytes
    except Exception:  # pragma: no cover - conservative fallback
        vmem = 64 * 1024 * 1024
    if vmem >= 96 * 1024 * 1024:
        # v5e / v6e: 128 MiB VMEM -> bigger blocks amortize per-step overhead.
        return 16 * 1024 * 1024
    # v7x: 64 MiB physical VMEM per TC -> keep 2*block + output well under it.
    return 8 * 1024 * 1024


def _choose_tile_b(batch, input_dim):
    """Byte-based batch-tile choice for the streaming x operand."""
    row_bytes = input_dim * 4

    # Tiny inputs: one block, rounded up to a sublane multiple.
    if batch * row_bytes <= 2 * 1024 * 1024:
        return max(8, ((batch + 7) // 8) * 8)

    target = _x_block_target_bytes()
    tile_b = target // max(row_bytes, 1)
    if tile_b >= 128:
        tile_b = (tile_b // 128) * 128
    else:
        tile_b = max(8, (tile_b // 8) * 8)

    # Ensure at least two grid steps so dimension_semantics=("parallel",) can
    # actually shard the batch over v7x's two TensorCores.
    while tile_b > 128 and -(-batch // tile_b) < 2:
        tile_b = max(128, ((tile_b // 2) // 128) * 128)

    return tile_b


def logreg_forward(x, weight, bias, *, tile_b=None):
    """Pallas equivalent of LogRegEMBase.forward.

    Args:
      x:      (batch, input_dim) float32
      weight: (1, input_dim) float32   (PyTorch nn.Linear weight layout)
      bias:   (1,) float32
    Returns:
      (batch, 1) float32 logits
    """
    B, D = x.shape
    if tile_b is None:
        tile_b = _choose_tile_b(B, D)

    num_tiles = pl.cdiv(B, tile_b)

    # One-time tiny transpose so the weight is the stationary MXU operand.
    wt = weight.T  # (D, 1)

    # VMEM need: double-buffered x blocks + resident weight + output blocks,
    # plus a little headroom for compiler scratch.
    needed = 2 * tile_b * D * 4 + 2 * (D * 4 + tile_b * 4) + (2 << 20)
    vmem_limit = int(min(max(needed, 32 << 20), 100 << 20))

    out = pl.pallas_call(
        _linear_kernel,
        grid=(num_tiles,),
        out_shape=jax.ShapeDtypeStruct((B, 1), jnp.float32),
        in_specs=[
            pl.BlockSpec((tile_b, D), lambda i: (i, 0)),   # x: streamed per tile
            pl.BlockSpec((D, 1), lambda i: (0, 0)),        # weight: VMEM-resident
            pl.BlockSpec(memory_space=pltpu.SMEM),         # bias scalar
        ],
        out_specs=pl.BlockSpec((tile_b, 1), lambda i: (i, 0)),
        compiler_params=pltpu.CompilerParams(
            dimension_semantics=("parallel",),             # v7x: shard over 2 TCs
            vmem_limit_bytes=vmem_limit,
        ),
        cost_estimate=pl.CostEstimate(
            flops=2 * B * D,
            transcendentals=0,
            bytes_accessed=B * D * 4 + D * 4 + B * 4 + 4,
        ),
    )(x, wt, bias)

    return out


if __name__ == "__main__":
    key = jax.random.PRNGKey(0)

    # --- small smoke test (shapes consistent with the module) ------------------
    batch, input_dim = 8, 32
    kx, kw, kb = jax.random.split(key, 3)
    x = jax.random.normal(kx, (batch, input_dim), dtype=jnp.float32)

    # Deterministic init mimicking nn.Linear default: U(-1/sqrt(D), 1/sqrt(D))
    bound = 1.0 / jnp.sqrt(jnp.float32(input_dim))
    weight = jax.random.uniform(kw, (1, input_dim), minval=-bound, maxval=bound,
                                dtype=jnp.float32)
    bias = jax.random.uniform(kb, (1,), minval=-bound, maxval=bound,
                              dtype=jnp.float32)

    out = logreg_forward(x, weight, bias)
    jax.block_until_ready(out)

    ref = x @ weight.T + bias
    assert out.shape == (batch, 1)
    assert jnp.allclose(out, ref, atol=1e-5, rtol=1e-5)

    # --- multi-tile + ragged-last-block check (no jnp.pad path) ----------------
    B2, D2 = 300, 128
    k1, k2, k3 = jax.random.split(jax.random.PRNGKey(1), 3)
    x2 = jax.random.normal(k1, (B2, D2), dtype=jnp.float32)
    bound2 = 1.0 / jnp.sqrt(jnp.float32(D2))
    w2 = jax.random.uniform(k2, (1, D2), minval=-bound2, maxval=bound2,
                            dtype=jnp.float32)
    b2 = jax.random.uniform(k3, (1,), minval=-bound2, maxval=bound2,
                            dtype=jnp.float32)

    out2 = logreg_forward(x2, w2, b2, tile_b=128)   # 3 grid steps, ragged tail
    jax.block_until_ready(out2)
    ref2 = x2 @ w2.T + b2
    assert out2.shape == (B2, 1)
    assert jnp.allclose(out2, ref2, atol=1e-4, rtol=1e-4)

    print("KERNEL_OK")
</pallas_src>

<mosaic_0001>
module attributes {stable_mosaic.version = 11 : i64} {
  func.func @_linear_kernel(%arg0: i32, %arg1: memref<8x32xf32, #tpu.memory_space<vmem>>, %arg2: memref<32x1xf32, #tpu.memory_space<vmem>>, %arg3: memref<1xf32, #tpu.memory_space<smem>>, %arg4: memref<8x1xf32, #tpu.memory_space<vmem>>) attributes {dimension_semantics = [#tpu.dimension_semantics<parallel>], iteration_bounds = array<i64: 1>, scalar_prefetch = 0 : i64, scratch_operands = 0 : i64, tpu.core_type = #tpu.core_type<tc>, window_params = [{transform_indices = @transform_0, window_bounds = array<i64: 8, 32>}, {pipeline_mode = #tpu.pipeline_mode<synchronous>, transform_indices = @transform_1, window_bounds = array<i64: 32, 1>}, {transform_indices = @transform_2, window_bounds = array<i64: 1>}, {transform_indices = @transform_3, window_bounds = array<i64: 8, 1>}]} {
    %c0 = arith.constant 0 : index
    %c0_0 = arith.constant 0 : index
    %0 = vector.load %arg1[%c0, %c0_0] : memref<8x32xf32, #tpu.memory_space<vmem>>, vector<8x32xf32>
    %c0_1 = arith.constant 0 : index
    %c0_2 = arith.constant 0 : index
    %1 = vector.load %arg2[%c0_1, %c0_2] : memref<32x1xf32, #tpu.memory_space<vmem>>, vector<32x1xf32>
    %cst = arith.constant dense<0.000000e+00> : vector<8x1xf32>
    %2 = tpu.matmul %0, %1, %cst {dimension_numbers = #tpu.dot_dimension_numbers<[1], [0], [0], [1], [0, 0, 1, 1], [], []>} : vector<8x32xf32>, vector<32x1xf32>, vector<8x1xf32> -> vector<8x1xf32>
    %c0_3 = arith.constant 0 : index
    %3 = memref.load %arg3[%c0_3] : memref<1xf32, #tpu.memory_space<smem>>
    %4 = vector.broadcast %3 : f32 to vector<8x1xf32>
    %5 = arith.addf %2, %4 : vector<8x1xf32>
    %c0_4 = arith.constant 0 : index
    %c0_5 = arith.constant 0 : index
    %6 = vector.load %arg4[%c0_4, %c0_5] : memref<8x1xf32, #tpu.memory_space<vmem>>, vector<8x1xf32>
    tpu.vector_store %arg4[%c0_4, %c0_5], %5 {strides = array<i32>} : memref<8x1xf32, #tpu.memory_space<vmem>>, vector<8x1xf32>,
    return
  }
  func.func @transform_0(%arg0: i32) -> (i32, i32) {
    %c0_i32 = arith.constant 0 : i32
    %c0_i32_0 = arith.constant 0 : i32
    return %arg0, %c0_i32 : i32, i32
  }
  func.func @transform_1(%arg0: i32) -> (i32, i32) {
    %c0_i32 = arith.constant 0 : i32
    %c0_i32_0 = arith.constant 0 : i32
    %c0_i32_1 = arith.constant 0 : i32
    return %c0_i32, %c0_i32_0 : i32, i32
  }
  func.func @transform_2(%arg0: i32) -> i32 {
    %c0_i32 = arith.constant 0 : i32
    %c0_i32_0 = arith.constant 0 : i32
    return %c0_i32 : i32
  }
  func.func @transform_3(%arg0: i32) -> (i32, i32) {
    %c0_i32 = arith.constant 0 : i32
    %c0_i32_0 = arith.constant 0 : i32
    return %arg0, %c0_i32 : i32, i32
  }
}

</mosaic_0001>

<llo_original>
// kernel: tpu_custom_call.1
$region0: #{tpu_custom_call.1}
  #allocation0 [shape = 'u32[]', space=smem, size = 0x4, offset = 0x4, fixed_abs, tag = 'smem constant byte address 0x4 - core index']
  #allocation1 [shape = 'u32[72,128]{1,0:T(1,128)}', space=vmem, size = 0x9000, scoped, tag = 'internal scratch']
  #allocation2 [shape = 'f32[1]{0:T(128)S(6)}', space=smem, size = 0x200, scoped, tag = 'scoped memory for tpu_custom_call.1']
  %s0 = inlined_call_operand.vmem [shape: f32[8,32], index: 0, kind: input, shape index: {}]
  %s1 = inlined_call_operand.vmem [shape: f32[32,1], index: 1, kind: input, shape index: {}]
  %s2 = inlined_call_operand.<no memory space> [shape: f32[1], index: 2, kind: input, shape index: {}]
  %s3 = inlined_call_operand.vmem [shape: f32[8,1], index: 3, kind: output, shape index: {}]
  %s4 = sld [smem:[#allocation0]]
  $region22: #{tpu_custom_call.1} parent=0
    _
  %s6 = ssub.s32 1, %s4
  %s7 = scalar_select 0, %s6, %s4
  %8 = sst [smem:[#allocation2]] %s2
  // Predicated region
  $region2: #{tpu_custom_call.1} parent=0 // pred_check
    _
  $region3: #{tpu_custom_call.1} parent=0 // pred_check_branch
    %10 = sbr.rel (0) target = $region5
  $region4: #{tpu_custom_call.1} parent=0 // pred_region
    _
  $region5: #{tpu_custom_call.1} parent=0 // pred_fallthru
    _
  // Predicated region
  $region6: #{tpu_custom_call.1} parent=0 // pred_check
    _
  $region7: #{tpu_custom_call.1} parent=0 // pred_check_branch
    %12 = sbr.rel (0) target = $region9
  $region8: #{tpu_custom_call.1} parent=0 // pred_region
    _
  $region9: #{tpu_custom_call.1} parent=0 // pred_fallthru
    _
  // Predicated region
  $region10: #{tpu_custom_call.1} parent=0 // pred_check
    _
  $region11: #{tpu_custom_call.1} parent=0 // pred_check_branch
    %14 = sbr.rel (0) target = $region13
  $region12: #{tpu_custom_call.1} parent=0 // pred_region
    _
  $region13: #{tpu_custom_call.1} parent=0 // pred_fallthru
    _
  %v15 = vld [vmem:[%s0] sm:$0xff]
  %v16 = vld [vmem:[%s1] sm:$0xff]
  %v17 = vld [vmem:[%s1 + $0x8] sm:$0xff]
  %v18 = vld [vmem:[%s1 + $0x10] sm:$0xff]
  %v19 = vld [vmem:[%s1 + $0x18] sm:$0xff]
  %s20 = sld [smem:[#allocation2]]
  %v21 = vstv %s20
  %vm22 = vcmask 261120
  %v24 = vsel %vm22, %v15, 0
  %26 = vmatpush.msra.mxu0 0.0
  %27 = vmatpush.msra.mxu0 0.0
  %28 = vmatpush.msra.mxu0 0.0
  %29 = vmatpush.msra.mxu0 0.0
  %30 = vmatpush.msra.mxu0 0.0
  %31 = vmatpush.msra.mxu0 0.0
  %32 = vmatpush.msra.mxu0 0.0
  %33 = vmatpush.msra.mxu0 0.0
  %34 = vmatpush.msra.mxu0 0.0
  %35 = vmatpush.msra.mxu0 0.0
  %36 = vmatpush.msra.mxu0 0.0
  %37 = vmatpush.msra.mxu0 0.0
  %38 = vmatpush.msra.mxu0 %v19
  %39 = vmatpush.msra.mxu0 %v18
  %40 = vmatpush.msra.mxu0 %v17
  %41 = vmatpush.msra.mxu0 %v16
  %42 = vmatmul.f32.gmra.mxu0 %v24
  %v43 = vpop.f32.mrf.mxu0
  %v44 = vadd.f32 %v21, %v43
  %45 = vdwg.mxu0
  %vm46 = vcmask 7168
  %47 = vst.msk [vmem:[%s3] sm:$0xff] %vm46, %v44
  // Predicated region
  $region14: #{tpu_custom_call.1} parent=0 // pred_check
    _
  $region15: #{tpu_custom_call.1} parent=0 // pred_check_branch
    %49 = sbr.rel (0) target = $region17
  $region16: #{tpu_custom_call.1} parent=0 // pred_region
    _
  $region17: #{tpu_custom_call.1} parent=0 // pred_fallthru
    _
  // Predicated region
  $region18: #{tpu_custom_call.1} parent=0 // pred_check
    _
  $region19: #{tpu_custom_call.1} parent=0 // pred_check_branch
    %51 = sbr.rel (0) target = $region21
  $region20: #{tpu_custom_call.1} parent=0 // pred_region
    _
  $region21: #{tpu_custom_call.1} parent=0 // pred_fallthru
    _

</llo_original>
